<compile_context>
chip_gen: v7x
topology: tpu7x:2x2x1
jax: 0.10.0
libtpu: 0.0.40
codegen_flags: <defaults>
</compile_context>

<pallas_src>
import math
import jax
import jax.numpy as jnp
from jax.experimental import pallas as pl
from jax.experimental.pallas import tpu as pltpu


LANE = 128  # lane width / MXU-friendly multiple


def _round_up(x, m):
    return ((x + m - 1) // m) * m


def _cdiv(a, b):
    return -(-a // b)


def _pad_to(arr, shape):
    pads = [(0, t - s) for s, t in zip(arr.shape, shape)]
    if all(p == (0, 0) for p in pads):
        return arr
    return jnp.pad(arr, pads)


# -----------------------------------------------------------------------------
# Kernel
# -----------------------------------------------------------------------------
def fnn_kernel(x_ref, we_ref, be_ref, w1_ref, b1_ref, wd_ref, bd_ref,
               out_ref, h_ref):
    # Encoder + hidden layer only once per M tile (first N step); result is
    # cached in a bf16 VMEM scratch and reused for every decoder N slab.
    @pl.when(pl.program_id(1) == 0)
    def _():
        # encoder: emb = x @ We + be   (no activation, matches PyTorch forward)
        emb = jnp.dot(x_ref[...], we_ref[...],
                      preferred_element_type=jnp.float32) + be_ref[...]
        # hidden layer: relu(emb @ W1 + b1); dropout == identity (eval mode)
        h = jnp.dot(emb.astype(jnp.bfloat16), w1_ref[...],
                    preferred_element_type=jnp.float32) + b1_ref[...]
        h_ref[...] = jnp.maximum(h, 0.0).astype(jnp.bfloat16)

    # decoder slab: h @ Wd[:, j-block] + bd[j-block]
    dec = jnp.dot(h_ref[...], wd_ref[...], preferred_element_type=jnp.float32)
    out_ref[...] = (dec + bd_ref[...]).astype(out_ref.dtype)


# -----------------------------------------------------------------------------
# One-time parameter preparation (pad + cast OUTSIDE the per-step forward path)
# -----------------------------------------------------------------------------
def prepare_params(params, tile_n_cap=512):
    we, be, w1, b1, wd, bd = params
    in_feat, ninp = we.shape
    nhid = w1.shape[1]
    ntoken = wd.shape[1]

    in_feat_p = _round_up(in_feat, LANE)
    ninp_p = _round_up(ninp, LANE)
    nhid_p = _round_up(nhid, LANE)

    ntok_p = _round_up(ntoken, LANE)
    if ntok_p > tile_n_cap:
        tile_n = tile_n_cap
        ntok_p = _round_up(ntoken, tile_n)   # pad so tile_n divides ntok_p
    else:
        tile_n = ntok_p

    padded = dict(
        we=_pad_to(we, (in_feat_p, ninp_p)).astype(jnp.bfloat16),
        w1=_pad_to(w1, (ninp_p, nhid_p)).astype(jnp.bfloat16),
        wd=_pad_to(wd, (nhid_p, ntok_p)).astype(jnp.bfloat16),
        be=_pad_to(be, (1, ninp_p)).astype(jnp.float32),
        b1=_pad_to(b1, (1, nhid_p)).astype(jnp.float32),
        bd=_pad_to(bd, (1, ntok_p)).astype(jnp.float32),
    )
    dims = dict(in_feat=in_feat, in_feat_p=in_feat_p, ninp_p=ninp_p,
                nhid_p=nhid_p, ntoken=ntoken, ntok_p=ntok_p, tile_n=tile_n)
    return padded, dims


# -----------------------------------------------------------------------------
# Tiling / VMEM budgeting
# -----------------------------------------------------------------------------
def _choose_tile_m(bptt, cap=512, min_steps=2):
    if bptt <= 8:
        return 8
    # >= min_steps grid steps so the "parallel" M axis feeds both v7x TCs, and
    # a divisor-aware tile so padding is at most one sublane group.
    steps = max(min_steps, _cdiv(bptt, cap))
    return _round_up(_cdiv(bptt, steps), 8)


def _vmem_bytes(tile_m, tile_n, d, grid_n, out_bytes):
    wd_bufs = 2 if grid_n > 1 else 1
    b = 2 * tile_m * d["in_feat_p"] * 2            # x tile (bf16, double buffered)
    b += 2 * tile_m * tile_n * out_bytes           # out tile (double buffered)
    b += wd_bufs * d["nhid_p"] * tile_n * 2        # decoder weight slab
    b += wd_bufs * 8 * tile_n * 4                  # decoder bias slab
    b += d["in_feat_p"] * d["ninp_p"] * 2          # We (resident, single buffer)
    b += d["ninp_p"] * d["nhid_p"] * 2             # W1 (resident, single buffer)
    b += 8 * (d["ninp_p"] + d["nhid_p"]) * 4       # be, b1
    b += tile_m * d["nhid_p"] * 2                  # h scratch (bf16)
    b += tile_m * (d["ninp_p"] + d["nhid_p"] + tile_n) * 4   # f32 intermediates
    return b


# -----------------------------------------------------------------------------
# Forward
# -----------------------------------------------------------------------------
def fnn_forward(x, prepared, out_dtype=jnp.float32):
    """x: [bptt, ntoken*regress_dim] -> decoded: [1, bptt, ntoken]."""
    padded, d = prepared
    bptt, in_feat = x.shape
    assert in_feat == d["in_feat"]

    tile_n = d["tile_n"]
    ntok_p = d["ntok_p"]
    grid_n = ntok_p // tile_n
    out_bytes = jnp.dtype(out_dtype).itemsize

    tile_m = _choose_tile_m(bptt)
    # shrink the M tile until the working set fits a conservative VMEM target
    while tile_m > 8 and _vmem_bytes(tile_m, tile_n, d, grid_n, out_bytes) > (48 << 20):
        tile_m = max(8, _round_up(tile_m // 2, 8))
    m_pad = _round_up(bptt, tile_m)
    grid_m = m_pad // tile_m

    vmem_limit = int(min(
        64 << 20,
        max(int(1.5 * _vmem_bytes(tile_m, tile_n, d, grid_n, out_bytes)), 16 << 20)))

    x_p = _pad_to(x, (m_pad, d["in_feat_p"])).astype(jnp.bfloat16)

    # Grid-invariant operands: single-buffer (constant index map -> no pipelining
    # benefit from double buffering, half the VMEM footprint).
    def resident(shape):
        return pl.BlockSpec(shape, lambda i, j: (0,) * len(shape),
                            pipeline_mode=pl.Buffered(1))

    if grid_n == 1:
        wd_spec = resident(padded["wd"].shape)
        bd_spec = resident(padded["bd"].shape)
    else:
        wd_spec = pl.BlockSpec((d["nhid_p"], tile_n), lambda i, j: (0, j))
        bd_spec = pl.BlockSpec((1, tile_n), lambda i, j: (0, j))

    flops = 2 * m_pad * (d["in_feat_p"] * d["ninp_p"]
                         + d["ninp_p"] * d["nhid_p"]
                         + d["nhid_p"] * ntok_p)
    bytes_accessed = int(
        x_p.size * 2
        + sum(int(v.size) * v.dtype.itemsize for v in padded.values())
        + m_pad * ntok_p * out_bytes)

    decoded_p = pl.pallas_call(
        fnn_kernel,
        out_shape=jax.ShapeDtypeStruct((m_pad, ntok_p), out_dtype),
        grid=(grid_m, grid_n),
        in_specs=[
            pl.BlockSpec((tile_m, d["in_feat_p"]), lambda i, j: (i, 0)),  # x: M-tiled
            resident(padded["we"].shape),
            resident(padded["be"].shape),
            resident(padded["w1"].shape),
            resident(padded["b1"].shape),
            wd_spec,
            bd_spec,
        ],
        out_specs=pl.BlockSpec((tile_m, tile_n), lambda i, j: (i, j)),
        scratch_shapes=[pltpu.VMEM((tile_m, d["nhid_p"]), jnp.bfloat16)],
        compiler_params=pltpu.CompilerParams(
            dimension_semantics=("parallel", "arbitrary"),
            vmem_limit_bytes=vmem_limit,
        ),
        cost_estimate=pl.CostEstimate(
            flops=flops, transcendentals=0, bytes_accessed=bytes_accessed),
    )(x_p, padded["we"], padded["be"], padded["w1"], padded["b1"],
      padded["wd"], padded["bd"])

    # strip padding; matches PyTorch: decoded.view(1, bptt, -1)
    return decoded_p[:bptt, :d["ntoken"]].reshape(1, bptt, d["ntoken"])


# -----------------------------------------------------------------------------
# Parameter init mirroring FNN_Model.init_weights
# -----------------------------------------------------------------------------
def init_params(key, ntoken, regress_dim, nhid, ninp=10):
    """normal(0, sqrt(2/(fan_in+fan_out))) weights, zero biases."""
    in_feat = ntoken * regress_dim
    k_enc, k_hid, k_dec = jax.random.split(key, 3)

    def layer(k, fin, fout):
        std = math.sqrt(2.0 / (fin + fout))
        w = std * jax.random.normal(k, (fin, fout), dtype=jnp.float32)  # stored [in, out]
        b = jnp.zeros((1, fout), dtype=jnp.float32)
        return w, b

    we, be = layer(k_enc, in_feat, ninp)
    w1, b1 = layer(k_hid, ninp, nhid)
    wd, bd = layer(k_dec, nhid, ntoken)
    return we, be, w1, b1, wd, bd


if __name__ == "__main__":
    # small shapes consistent with the module
    ntoken = 16
    regress_dim = 2
    nhid = 32
    bptt = 8

    key = jax.random.PRNGKey(0)
    k_x, k_p = jax.random.split(key)
    x = jax.random.normal(k_x, (bptt, ntoken * regress_dim), dtype=jnp.float32)
    params = init_params(k_p, ntoken, regress_dim, nhid)

    prepared = prepare_params(params)          # one-time pad + bf16 cast
    decoded = fnn_forward(x, prepared)
    decoded = jax.block_until_ready(decoded)
    assert decoded.shape == (1, bptt, ntoken)

    # cross-check against plain-JAX reference using the same bf16-in / f32-acc path
    we, be, w1, b1, wd, bd = params
    bf = jnp.bfloat16
    emb = jnp.dot(x.astype(bf), we.astype(bf), preferred_element_type=jnp.float32) + be
    h = jnp.maximum(
        jnp.dot(emb.astype(bf), w1.astype(bf), preferred_element_type=jnp.float32) + b1, 0.0)
    ref_bf16 = (jnp.dot(h.astype(bf), wd.astype(bf), preferred_element_type=jnp.float32)
                + bd).reshape(1, bptt, ntoken)
    assert jnp.allclose(decoded, ref_bf16, atol=1e-3, rtol=1e-3)

    # sanity check vs full-f32 reference (loose tolerance for bf16 matmul inputs)
    emb32 = x @ we + be
    h32 = jnp.maximum(emb32 @ w1 + b1, 0.0)
    ref_f32 = (h32 @ wd + bd).reshape(1, bptt, ntoken)
    assert jnp.allclose(decoded, ref_f32, atol=5e-2, rtol=5e-2)

    print("KERNEL_OK")
</pallas_src>

<mosaic_0001>
module attributes {stable_mosaic.version = 11 : i64} {
  func.func @fnn_kernel(%arg0: i32, %arg1: i32, %arg2: memref<8x128xbf16, #tpu.memory_space<vmem>>, %arg3: memref<128x128xbf16, #tpu.memory_space<vmem>>, %arg4: memref<1x128xf32, #tpu.memory_space<vmem>>, %arg5: memref<128x128xbf16, #tpu.memory_space<vmem>>, %arg6: memref<1x128xf32, #tpu.memory_space<vmem>>, %arg7: memref<128x128xbf16, #tpu.memory_space<vmem>>, %arg8: memref<1x128xf32, #tpu.memory_space<vmem>>, %arg9: memref<8x128xf32, #tpu.memory_space<vmem>>, %arg10: memref<8x128xbf16, #tpu.memory_space<vmem>>) attributes {dimension_semantics = [#tpu.dimension_semantics<parallel>, #tpu.dimension_semantics<arbitrary>], iteration_bounds = array<i64: 1, 1>, scalar_prefetch = 0 : i64, scratch_operands = 1 : i64, tpu.core_type = #tpu.core_type<tc>, window_params = [{transform_indices = @transform_0, window_bounds = array<i64: 8, 128>}, {pipeline_mode = #tpu.pipeline_mode<synchronous>, transform_indices = @transform_1, window_bounds = array<i64: 128, 128>}, {pipeline_mode = #tpu.pipeline_mode<synchronous>, transform_indices = @transform_2, window_bounds = array<i64: 1, 128>}, {pipeline_mode = #tpu.pipeline_mode<synchronous>, transform_indices = @transform_3, window_bounds = array<i64: 128, 128>}, {pipeline_mode = #tpu.pipeline_mode<synchronous>, transform_indices = @transform_4, window_bounds = array<i64: 1, 128>}, {pipeline_mode = #tpu.pipeline_mode<synchronous>, transform_indices = @transform_5, window_bounds = array<i64: 128, 128>}, {pipeline_mode = #tpu.pipeline_mode<synchronous>, transform_indices = @transform_6, window_bounds = array<i64: 1, 128>}, {transform_indices = @transform_7, window_bounds = array<i64: 8, 128>}]} {
    %c0_i32 = arith.constant 0 : i32
    %0 = arith.cmpi eq, %arg1, %c0_i32 : i32
    %1 = arith.extui %0 : i1 to i32
    %c0_i32_0 = arith.constant 0 : i32
    %2 = arith.cmpi ne, %1, %c0_i32_0 : i32
    scf.if %2 {
      %c0_8 = arith.constant 0 : index
      %c0_9 = arith.constant 0 : index
      %10 = vector.load %arg2[%c0_8, %c0_9] : memref<8x128xbf16, #tpu.memory_space<vmem>>, vector<8x128xbf16>
      %c0_10 = arith.constant 0 : index
      %c0_11 = arith.constant 0 : index
      %11 = vector.load %arg3[%c0_10, %c0_11] : memref<128x128xbf16, #tpu.memory_space<vmem>>, vector<128x128xbf16>
      %cst_12 = arith.constant dense<0.000000e+00> : vector<8x128xf32>
      %12 = tpu.matmul %10, %11, %cst_12 {dimension_numbers = #tpu.dot_dimension_numbers<[1], [0], [0], [1], [0, 0, 1, 1], [], []>} : vector<8x128xbf16>, vector<128x128xbf16>, vector<8x128xf32> -> vector<8x128xf32>
      %c0_13 = arith.constant 0 : index
      %c0_14 = arith.constant 0 : index
      %13 = vector.load %arg4[%c0_13, %c0_14] : memref<1x128xf32, #tpu.memory_space<vmem>>, vector<1x128xf32>
      %14 = vector.broadcast %13 : vector<1x128xf32> to vector<8x128xf32>
      %15 = arith.addf %12, %14 : vector<8x128xf32>
      %16 = arith.truncf %15 : vector<8x128xf32> to vector<8x128xbf16>
      %c0_15 = arith.constant 0 : index
      %c0_16 = arith.constant 0 : index
      %17 = vector.load %arg5[%c0_15, %c0_16] : memref<128x128xbf16, #tpu.memory_space<vmem>>, vector<128x128xbf16>
      %cst_17 = arith.constant dense<0.000000e+00> : vector<8x128xf32>
      %18 = tpu.matmul %16, %17, %cst_17 {dimension_numbers = #tpu.dot_dimension_numbers<[1], [0], [0], [1], [0, 0, 1, 1], [], []>} : vector<8x128xbf16>, vector<128x128xbf16>, vector<8x128xf32> -> vector<8x128xf32>
      %c0_18 = arith.constant 0 : index
      %c0_19 = arith.constant 0 : index
      %19 = vector.load %arg6[%c0_18, %c0_19] : memref<1x128xf32, #tpu.memory_space<vmem>>, vector<1x128xf32>
      %20 = vector.broadcast %19 : vector<1x128xf32> to vector<8x128xf32>
      %21 = arith.addf %18, %20 : vector<8x128xf32>
      %cst_20 = arith.constant 0.000000e+00 : f32
      %22 = vector.broadcast %cst_20 : f32 to vector<8x128xf32>
      %23 = arith.maximumf %21, %22 : vector<8x128xf32>
      %24 = arith.truncf %23 : vector<8x128xf32> to vector<8x128xbf16>
      %c0_21 = arith.constant 0 : index
      %c0_22 = arith.constant 0 : index
      %25 = vector.load %arg10[%c0_21, %c0_22] : memref<8x128xbf16, #tpu.memory_space<vmem>>, vector<8x128xbf16>
      tpu.vector_store %arg10[%c0_21, %c0_22], %24 {strides = array<i32>} : memref<8x128xbf16, #tpu.memory_space<vmem>>, vector<8x128xbf16>,
    } else {
    }
    %c0 = arith.constant 0 : index
    %c0_1 = arith.constant 0 : index
    %3 = vector.load %arg10[%c0, %c0_1] : memref<8x128xbf16, #tpu.memory_space<vmem>>, vector<8x128xbf16>
    %c0_2 = arith.constant 0 : index
    %c0_3 = arith.constant 0 : index
    %4 = vector.load %arg7[%c0_2, %c0_3] : memref<128x128xbf16, #tpu.memory_space<vmem>>, vector<128x128xbf16>
    %cst = arith.constant dense<0.000000e+00> : vector<8x128xf32>
    %5 = tpu.matmul %3, %4, %cst {dimension_numbers = #tpu.dot_dimension_numbers<[1], [0], [0], [1], [0, 0, 1, 1], [], []>} : vector<8x128xbf16>, vector<128x128xbf16>, vector<8x128xf32> -> vector<8x128xf32>
    %c0_4 = arith.constant 0 : index
    %c0_5 = arith.constant 0 : index
    %6 = vector.load %arg8[%c0_4, %c0_5] : memref<1x128xf32, #tpu.memory_space<vmem>>, vector<1x128xf32>
    %7 = vector.broadcast %6 : vector<1x128xf32> to vector<8x128xf32>
    %8 = arith.addf %5, %7 : vector<8x128xf32>
    %c0_6 = arith.constant 0 : index
    %c0_7 = arith.constant 0 : index
    %9 = vector.load %arg9[%c0_6, %c0_7] : memref<8x128xf32, #tpu.memory_space<vmem>>, vector<8x128xf32>
    tpu.vector_store %arg9[%c0_6, %c0_7], %8 {strides = array<i32>} : memref<8x128xf32, #tpu.memory_space<vmem>>, vector<8x128xf32>,
    return
  }
  func.func @transform_0(%arg0: i32, %arg1: i32) -> (i32, i32) {
    %c0_i32 = arith.constant 0 : i32
    %c0_i32_0 = arith.constant 0 : i32
    return %arg0, %c0_i32 : i32, i32
  }
  func.func @transform_1(%arg0: i32, %arg1: i32) -> (i32, i32) {
    %c0_i32 = arith.constant 0 : i32
    %c0_i32_0 = arith.constant 0 : i32
    %c0_i32_1 = arith.constant 0 : i32
    return %c0_i32, %c0_i32_0 : i32, i32
  }
  func.func @transform_2(%arg0: i32, %arg1: i32) -> (i32, i32) {
    %c0_i32 = arith.constant 0 : i32
    %c0_i32_0 = arith.constant 0 : i32
    %c0_i32_1 = arith.constant 0 : i32
    return %c0_i32, %c0_i32_0 : i32, i32
  }
  func.func @transform_3(%arg0: i32, %arg1: i32) -> (i32, i32) {
    %c0_i32 = arith.constant 0 : i32
    %c0_i32_0 = arith.constant 0 : i32
    %c0_i32_1 = arith.constant 0 : i32
    return %c0_i32, %c0_i32_0 : i32, i32
  }
  func.func @transform_4(%arg0: i32, %arg1: i32) -> (i32, i32) {
    %c0_i32 = arith.constant 0 : i32
    %c0_i32_0 = arith.constant 0 : i32
    %c0_i32_1 = arith.constant 0 : i32
    return %c0_i32, %c0_i32_0 : i32, i32
  }
  func.func @transform_5(%arg0: i32, %arg1: i32) -> (i32, i32) {
    %c0_i32 = arith.constant 0 : i32
    %c0_i32_0 = arith.constant 0 : i32
    %c0_i32_1 = arith.constant 0 : i32
    return %c0_i32, %c0_i32_0 : i32, i32
  }
  func.func @transform_6(%arg0: i32, %arg1: i32) -> (i32, i32) {
    %c0_i32 = arith.constant 0 : i32
    %c0_i32_0 = arith.constant 0 : i32
    %c0_i32_1 = arith.constant 0 : i32
    return %c0_i32, %c0_i32_0 : i32, i32
  }
  func.func @transform_7(%arg0: i32, %arg1: i32) -> (i32, i32) {
    %c0_i32 = arith.constant 0 : i32
    return %arg0, %arg1 : i32, i32
  }
}

</mosaic_0001>

<llo_original>
// kernel: tpu_custom_call.1
$region0: #{tpu_custom_call.1}
  #allocation0 [shape = 'u32[]', space=smem, size = 0x4, offset = 0x4, fixed_abs, tag = 'smem constant byte address 0x4 - core index']
  #allocation1 [shape = 'u32[144,128]{1,0:T(1,128)}', space=vmem, size = 0x12000, scoped, tag = 'internal scratch']
  #allocation2 [shape = 'bf16[8,128]{1,0:T(8,128)(2,1)}', space=vmem, size = 0x800, scoped, tag = 'scratch operand']
  %s0 = inlined_call_operand.hbm [shape: bf16[8,128], index: 0, kind: input, shape index: {}]
  %s1 = inlined_call_operand.hbm [shape: bf16[128,128], index: 1, kind: input, shape index: {}]
  %s2 = inlined_call_operand.vmem [shape: f32[1,128], index: 2, kind: input, shape index: {}]
  %s3 = inlined_call_operand.hbm [shape: bf16[128,128], index: 3, kind: input, shape index: {}]
  %s4 = inlined_call_operand.vmem [shape: f32[1,128], index: 4, kind: input, shape index: {}]
  %s5 = inlined_call_operand.hbm [shape: bf16[128,128], index: 5, kind: input, shape index: {}]
  %s6 = inlined_call_operand.vmem [shape: f32[1,128], index: 6, kind: input, shape index: {}]
  %s7 = inlined_call_operand.hbm [shape: f32[8,128], index: 7, kind: output, shape index: {}]
  %s8 = sld [smem:[#allocation0]]
  $region58: #{tpu_custom_call.1} parent=0
    _
  %s10 = ssub.s32 1, %s8
  %s11 = scalar_select 0, %s10, %s8
  $region1: #{tpu_custom_call.1} parent=0
    #allocation3 [shape = 'u8[2048]{0}', space=vmem, size = 0x800, scoped, tag = 'input window, operand 0, single buffered']
    #allocation4 [shape = 's32[1]{0}', space=sflag, size = 0x4, scoped, tag = 'scoped memory for tpu_custom_call.1']
    #allocation5 [shape = 's32[1]{0}', space=sflag, size = 0x4, scoped, tag = 'scoped memory for tpu_custom_call.1']
    #allocation6 [shape = 'u8[32768]{0}', space=vmem, size = 0x8000, scoped, tag = 'input window, operand 1, single buffered']
    #allocation7 [shape = 's32[1]{0}', space=sflag, size = 0x4, scoped, tag = 'scoped memory for tpu_custom_call.1']
    #allocation8 [shape = 'u8[32768]{0}', space=vmem, size = 0x8000, scoped, tag = 'input window, operand 3, single buffered']
    #allocation9 [shape = 'u8[32768]{0}', space=vmem, size = 0x8000, scoped, tag = 'input window, operand 5, single buffered']
    #allocation10 [shape = 's32[1]{0}', space=sflag, size = 0x4, scoped, tag = 'scoped memory for tpu_custom_call.1']
    #allocation11 [shape = 'u8[4096]{0}', space=vmem, size = 0x1000, scoped, tag = 'output window, operand 0, single buffered']
    %12 = vsyncpa [#allocation4], 0
    %13 = vsyncpa [#allocation7], 0
    %14 = vsyncpa [#allocation10], 0
    %15 = vsyncpa [#allocation5], 0
    // Predicated region
    $region2: #{tpu_custom_call.1} parent=1 // pred_check
      _
    $region3: #{tpu_custom_call.1} parent=1 // pred_check_branch
      %17 = sbr.rel (0) target = $region5
    $region4: #{tpu_custom_call.1} parent=1 // pred_region
      %s19 = ssub.s32 64, 64
      %20 = vsyncadd [#allocation4], %s19
      %s22 = sshll.u32 [#allocation3], 4
      %s23 = int_to_ptr.vmem [resolvable:$true] %s22
      %25 = dma.hbm_to_vmem [thread:$0]  %s0, 64, %s23, [#allocation4]
    $region5: #{tpu_custom_call.1} parent=1 // pred_fallthru
      _
    // Predicated region
    $region6: #{tpu_custom_call.1} parent=1 // pred_check
      _
    $region7: #{tpu_custom_call.1} parent=1 // pred_check_branch
      %27 = sbr.rel (0) target = $region9
    $region8: #{tpu_custom_call.1} parent=1 // pred_region
      %s29 = ssub.s32 1024, 1024
      %30 = vsyncadd [#allocation7], %s29
      %s31 = sshll.u32 [#allocation6], 4
      %s32 = int_to_ptr.vmem [resolvable:$true] %s31
      %37 = dma.hbm_to_vmem [thread:$0]  %s1, 1024, %s32, [#allocation7], 64, 64, 4
    $region9: #{tpu_custom_call.1} parent=1 // pred_fallthru
      _
    // Predicated region
    $region10: #{tpu_custom_call.1} parent=1 // pred_check
      _
    $region11: #{tpu_custom_call.1} parent=1 // pred_check_branch
      %39 = sbr.rel (0) target = $region13
    $region12: #{tpu_custom_call.1} parent=1 // pred_region
      _
    $region13: #{tpu_custom_call.1} parent=1 // pred_fallthru
      _
    // Predicated region
    $region14: #{tpu_custom_call.1} parent=1 // pred_check
      _
    $region15: #{tpu_custom_call.1} parent=1 // pred_check_branch
      %41 = sbr.rel (0) target = $region17
    $region16: #{tpu_custom_call.1} parent=1 // pred_region
      %s43 = ssub.s32 1024, 1024
      %44 = vsyncadd [#allocation7], %s43
      %s45 = sshll.u32 [#allocation8], 4
      %s46 = int_to_ptr.vmem [resolvable:$true] %s45
      %51 = dma.hbm_to_vmem [thread:$0]  %s3, 1024, %s46, [#allocation7], 64, 64, 4
    $region17: #{tpu_custom_call.1} parent=1 // pred_fallthru
      _
    // Predicated region
    $region18: #{tpu_custom_call.1} parent=1 // pred_check
      _
    $region19: #{tpu_custom_call.1} parent=1 // pred_check_branch
      %53 = sbr.rel (0) target = $region21
    $region20: #{tpu_custom_call.1} parent=1 // pred_region
      _
    $region21: #{tpu_custom_call.1} parent=1 // pred_fallthru
      _
    // Predicated region
    $region22: #{tpu_custom_call.1} parent=1 // pred_check
      _
    $region23: #{tpu_custom_call.1} parent=1 // pred_check_branch
      %55 = sbr.rel (0) target = $region25
    $region24: #{tpu_custom_call.1} parent=1 // pred_region
      %s57 = ssub.s32 1024, 1024
      %58 = vsyncadd [#allocation10], %s57
      %s59 = sshll.u32 [#allocation9], 4
      %s60 = int_to_ptr.vmem [resolvable:$true] %s59
      %65 = dma.hbm_to_vmem [thread:$0]  %s5, 1024, %s60, [#allocation10], 64, 64, 4
    $region25: #{tpu_custom_call.1} parent=1 // pred_fallthru
      _
    // Predicated region
    $region26: #{tpu_custom_call.1} parent=1 // pred_check
      _
    $region27: #{tpu_custom_call.1} parent=1 // pred_check_branch
      %67 = sbr.rel (0) target = $region29
    $region28: #{tpu_custom_call.1} parent=1 // pred_region
      _
    $region29: #{tpu_custom_call.1} parent=1 // pred_fallthru
      _
    // Predicated region
    $region30: #{tpu_custom_call.1} parent=1 // pred_check
      _
    $region31: #{tpu_custom_call.1} parent=1 // pred_check_branch
      %69 = sbr.rel (0) target = $region33
    $region32: #{tpu_custom_call.1} parent=1 // pred_region
      %70 = dma.done [#allocation4], 64
    $region33: #{tpu_custom_call.1} parent=1 // pred_fallthru
      _
    // Predicated region
    $region34: #{tpu_custom_call.1} parent=1 // pred_check
      _
    $region35: #{tpu_custom_call.1} parent=1 // pred_check_branch
      %72 = sbr.rel (0) target = $region37
    $region36: #{tpu_custom_call.1} parent=1 // pred_region
      %73 = dma.done [#allocation7], 1024
    $region37: #{tpu_custom_call.1} parent=1 // pred_fallthru
      _
    // Predicated region
    $region38: #{tpu_custom_call.1} parent=1 // pred_check
      _
    $region39: #{tpu_custom_call.1} parent=1 // pred_check_branch
      %75 = sbr.rel (0) target = $region41
    $region40: #{tpu_custom_call.1} parent=1 // pred_region
      %76 = dma.done [#allocation7], 1024
    $region41: #{tpu_custom_call.1} parent=1 // pred_fallthru
      _
    // Predicated region
    $region42: #{tpu_custom_call.1} parent=1 // pred_check
      _
    $region43: #{tpu_custom_call.1} parent=1 // pred_check_branch
      %78 = sbr.rel (0) target = $region45
    $region44: #{tpu_custom_call.1} parent=1 // pred_region
      %79 = dma.done [#allocation10], 1024
    $region45: #{tpu_custom_call.1} parent=1 // pred_fallthru
      _
    %p81 = scmp.eq.s32.totalorder 0, 0
    // Predicated region
    $region46: #{tpu_custom_call.1} parent=1 // pred_check
      %p82 = pneg %p81
    $region47: #{tpu_custom_call.1} parent=1 // pred_check_branch
      %84 = sbr.rel (%p82) target = $region49
    $region48: #{tpu_custom_call.1} parent=1 // pred_region
      %v85 = vld [vmem:[#allocation3] sm:$0xf]
      %v86 = vld [vmem:[#allocation6] sm:$0xf]
      %v87 = vld [vmem:[#allocation6 + $0x4] sm:$0xf]
      %v88 = vld [vmem:[#allocation6 + $0x8] sm:$0xf]
      %v89 = vld [vmem:[#allocation6 + $0xc] sm:$0xf]
      %v90 = vld [vmem:[#allocation6 + $0x10] sm:$0xf]
      %v91 = vld [vmem:[#allocation6 + $0x14] sm:$0xf]
      %v92 = vld [vmem:[#allocation6 + $0x18] sm:$0xf]
      %v93 = vld [vmem:[#allocation6 + $0x1c] sm:$0xf]
      %v94 = vld [vmem:[#allocation6 + $0x20] sm:$0xf]
      %v95 = vld [vmem:[#allocation6 + $0x24] sm:$0xf]
      %v96 = vld [vmem:[#allocation6 + $0x28] sm:$0xf]
      %v97 = vld [vmem:[#allocation6 + $0x2c] sm:$0xf]
      %v98 = vld [vmem:[#allocation6 + $0x30] sm:$0xf]
      %v99 = vld [vmem:[#allocation6 + $0x34] sm:$0xf]
      %v100 = vld [vmem:[#allocation6 + $0x38] sm:$0xf]
      %v101 = vld [vmem:[#allocation6 + $0x3c] sm:$0xf]
      %v102 = vld [vmem:[%s2] sm:$0x1]
      %v104 = vlaneseq
      %v105 = vshrl.u32 %v104, 7
      %v106 = vsub.s32 0, %v105
      %v107 = vrot.slane %v102, %v106
      %v125 = vunpack.c.l.b16 %v86
      %v126 = vunpack.c.l.b16 %v87
      %v127 = vunpack.c.l.b16 %v88
      %v128 = vunpack.c.l.b16 %v89
      %v129 = vunpack.c.l.b16 %v90
      %v130 = vunpack.c.l.b16 %v91
      %v131 = vunpack.c.l.b16 %v92
      %v132 = vunpack.c.l.b16 %v93
      %v133 = vunpack.c.l.b16 %v94
      %v134 = vunpack.c.l.b16 %v95
      %v135 = vunpack.c.l.b16 %v96
      %v136 = vunpack.c.l.b16 %v97
      %v137 = vunpack.c.l.b16 %v98
      %v138 = vunpack.c.l.b16 %v99
      %v139 = vunpack.c.l.b16 %v100
      %v140 = vunpack.c.l.b16 %v101
      %v141 = vpack.c.b16 %v126, %v125
      %v142 = vpack.c.b16 %v128, %v127
      %v143 = vpack.c.b16 %v130, %v129
      %v144 = vpack.c.b16 %v132, %v131
      %v145 = vpack.c.b16 %v134, %v133
      %v146 = vpack.c.b16 %v136, %v135
      %v147 = vpack.c.b16 %v138, %v137
      %v148 = vpack.c.b16 %v140, %v139
      %157 = vmatprep.subr.bf16.mxu0 0
      %158 = vmatpush1.bf16.msra.mxu0 %v141
      %159 = vmatprep.subr.bf16.mxu0 0
      %160 = vmatpush1.bf16.msra.mxu0 %v142
      %161 = vmatprep.subr.bf16.mxu0 0
      %162 = vmatpush1.bf16.msra.mxu0 %v143
      %163 = vmatprep.subr.bf16.mxu0 0
      %164 = vmatpush1.bf16.msra.mxu0 %v144
      %165 = vmatprep.subr.bf16.mxu0 0
      %166 = vmatpush1.bf16.msra.mxu0 %v145
      %167 = vmatprep.subr.bf16.mxu0 0
      %168 = vmatpush1.bf16.msra.mxu0 %v146
      %169 = vmatprep.subr.bf16.mxu0 0
      %170 = vmatpush1.bf16.msra.mxu0 %v147
      %171 = vmatprep.subr.bf16.mxu0 0
      %172 = vmatpush1.bf16.msra.mxu0 %v148
      %173 = vmatprep.subr.bf16.mxu0 0
      %174 = vmatpush1.bf16.msra.mxu0 0
      %175 = vmatprep.subr.bf16.mxu0 0
      %176 = vmatpush1.bf16.msra.mxu0 0
      %177 = vmatprep.subr.bf16.mxu0 0
      %178 = vmatpush1.bf16.msra.mxu0 0
      %179 = vmatprep.subr.bf16.mxu0 0
      %180 = vmatpush1.bf16.msra.mxu0 0
      %181 = vmatprep.subr.bf16.mxu0 0
      %182 = vmatpush1.bf16.msra.mxu0 0
      %183 = vmatprep.subr.bf16.mxu0 0
      %184 = vmatpush1.bf16.msra.mxu0 0
      %185 = vmatprep.subr.bf16.mxu0 0
      %186 = vmatpush1.bf16.msra.mxu0 0
      %187 = vmatprep.subr.bf16.mxu0 0
      %188 = vmatpush1.bf16.msra.mxu0 0
      %189 = vmatprep.mubr.bf16.mxu0 0
      %190 = vmatmul.mubr.bf16.gmra.mrb[0].mxu0 %v85
      %v191 = vpop.f32.mrb[0].mxu0
      %v192 = vadd.f32 %v107, %v191
      %v193 = vpop.f32.mrb[0].mxu0
      %v194 = vpop.f32.mrb[0].mxu0
      %v195 = vpop.f32.mrb[0].mxu0
      %196 = vdwg.mxu0
      %v197 = vpack.c.bf16 %v192, %v192
      %v198 = vld [vmem:[#allocation8] sm:$0xf]
      %v199 = vld [vmem:[#allocation8 + $0x4] sm:$0xf]
      %v200 = vld [vmem:[#allocation8 + $0x8] sm:$0xf]
      %v201 = vld [vmem:[#allocation8 + $0xc] sm:$0xf]
      %v202 = vld [vmem:[#allocation8 + $0x10] sm:$0xf]
      %v203 = vld [vmem:[#allocation8 + $0x14] sm:$0xf]
      %v204 = vld [vmem:[#allocation8 + $0x18] sm:$0xf]
      %v205 = vld [vmem:[#allocation8 + $0x1c] sm:$0xf]
      %v206 = vld [vmem:[#allocation8 + $0x20] sm:$0xf]
      %v207 = vld [vmem:[#allocation8 + $0x24] sm:$0xf]
      %v208 = vld [vmem:[#allocation8 + $0x28] sm:$0xf]
      %v209 = vld [vmem:[#allocation8 + $0x2c] sm:$0xf]
      %v210 = vld [vmem:[#allocation8 + $0x30] sm:$0xf]
      %v211 = vld [vmem:[#allocation8 + $0x34] sm:$0xf]
      %v212 = vld [vmem:[#allocation8 + $0x38] sm:$0xf]
      %v213 = vld [vmem:[#allocation8 + $0x3c] sm:$0xf]
      %v214 = vld [vmem:[%s4] sm:$0x1]
      %v216 = vlaneseq
      %v217 = vshrl.u32 %v216, 7
      %v218 = vsub.s32 0, %v217
      %v219 = vrot.slane %v214, %v218
      %v237 = vunpack.c.l.b16 %v198
      %v238 = vunpack.c.l.b16 %v199
      %v239 = vunpack.c.l.b16 %v200
      %v240 = vunpack.c.l.b16 %v201
      %v241 = vunpack.c.l.b16 %v202
      %v242 = vunpack.c.l.b16 %v203
      %v243 = vunpack.c.l.b16 %v204
      %v244 = vunpack.c.l.b16 %v205
      %v245 = vunpack.c.l.b16 %v206
      %v246 = vunpack.c.l.b16 %v207
      %v247 = vunpack.c.l.b16 %v208
      %v248 = vunpack.c.l.b16 %v209
      %v249 = vunpack.c.l.b16 %v210
      %v250 = vunpack.c.l.b16 %v211
      %v251 = vunpack.c.l.b16 %v212
      %v252 = vunpack.c.l.b16 %v213
      %v253 = vpack.c.b16 %v238, %v237
      %v254 = vpack.c.b16 %v240, %v239
      %v255 = vpack.c.b16 %v242, %v241
      %v256 = vpack.c.b16 %v244, %v243
      %v257 = vpack.c.b16 %v246, %v245
      %v258 = vpack.c.b16 %v248, %v247
      %v259 = vpack.c.b16 %v250, %v249
      %v260 = vpack.c.b16 %v252, %v251
      %269 = vmatprep.subr.bf16.mxu0 0
      %270 = vmatpush1.bf16.msra.mxu0 %v253
      %271 = vmatprep.subr.bf16.mxu0 0
      %272 = vmatpush1.bf16.msra.mxu0 %v254
      %273 = vmatprep.subr.bf16.mxu0 0
      %274 = vmatpush1.bf16.msra.mxu0 %v255
      %275 = vmatprep.subr.bf16.mxu0 0
      %276 = vmatpush1.bf16.msra.mxu0 %v256
      %277 = vmatprep.subr.bf16.mxu0 0
      %278 = vmatpush1.bf16.msra.mxu0 %v257
      %279 = vmatprep.subr.bf16.mxu0 0
      %280 = vmatpush1.bf16.msra.mxu0 %v258
      %281 = vmatprep.subr.bf16.mxu0 0
      %282 = vmatpush1.bf16.msra.mxu0 %v259
      %283 = vmatprep.subr.bf16.mxu0 0
      %284 = vmatpush1.bf16.msra.mxu0 %v260
      %285 = vmatprep.subr.bf16.mxu0 0
      %286 = vmatpush1.bf16.msra.mxu0 0
      %287 = vmatprep.subr.bf16.mxu0 0
      %288 = vmatpush1.bf16.msra.mxu0 0
      %289 = vmatprep.subr.bf16.mxu0 0
      %290 = vmatpush1.bf16.msra.mxu0 0
      %291 = vmatprep.subr.bf16.mxu0 0
      %292 = vmatpush1.bf16.msra.mxu0 0
      %293 = vmatprep.subr.bf16.mxu0 0
      %294 = vmatpush1.bf16.msra.mxu0 0
      %295 = vmatprep.subr.bf16.mxu0 0
      %296 = vmatpush1.bf16.msra.mxu0 0
      %297 = vmatprep.subr.bf16.mxu0 0
      %298 = vmatpush1.bf16.msra.mxu0 0
      %299 = vmatprep.subr.bf16.mxu0 0
      %300 = vmatpush1.bf16.msra.mxu0 0
      %301 = vmatprep.mubr.bf16.mxu0 0
      %302 = vmatmul.mubr.bf16.gmra.mrb[0].mxu0 %v197
      %v303 = vpop.f32.mrb[0].mxu0
      %v304 = vadd.f32 %v219, %v303
      %v305 = vpop.f32.mrb[0].mxu0
      %v306 = vpop.f32.mrb[0].mxu0
      %v307 = vpop.f32.mrb[0].mxu0
      %308 = vdwg.mxu0
      %v309 = vmax.f32 %v304, 0.0
      %v310 = vpack.c.bf16 %v309, %v309
      %311 = vst [vmem:[#allocation2] sm:$0xf] %v310
    $region49: #{tpu_custom_call.1} parent=1 // pred_fallthru
      _
    %v312 = vld [vmem:[#allocation2] sm:$0xf]
    %v313 = vld [vmem:[#allocation9] sm:$0xf]
    %v314 = vld [vmem:[#allocation9 + $0x4] sm:$0xf]
    %v315 = vld [vmem:[#allocation9 + $0x8] sm:$0xf]
    %v316 = vld [vmem:[#allocation9 + $0xc] sm:$0xf]
    %v317 = vld [vmem:[#allocation9 + $0x10] sm:$0xf]
    %v318 = vld [vmem:[#allocation9 + $0x14] sm:$0xf]
    %v319 = vld [vmem:[#allocation9 + $0x18] sm:$0xf]
    %v320 = vld [vmem:[#allocation9 + $0x1c] sm:$0xf]
    %v321 = vld [vmem:[#allocation9 + $0x20] sm:$0xf]
    %v322 = vld [vmem:[#allocation9 + $0x24] sm:$0xf]
    %v323 = vld [vmem:[#allocation9 + $0x28] sm:$0xf]
    %v324 = vld [vmem:[#allocation9 + $0x2c] sm:$0xf]
    %v325 = vld [vmem:[#allocation9 + $0x30] sm:$0xf]
    %v326 = vld [vmem:[#allocation9 + $0x34] sm:$0xf]
    %v327 = vld [vmem:[#allocation9 + $0x38] sm:$0xf]
    %v328 = vld [vmem:[#allocation9 + $0x3c] sm:$0xf]
    %v329 = vld [vmem:[%s6] sm:$0x1]
    %v331 = vlaneseq
    %v332 = vshrl.u32 %v331, 7
    %v333 = vsub.s32 0, %v332
    %v334 = vrot.slane %v329, %v333
    %v352 = vunpack.c.l.b16 %v313
    %v353 = vunpack.c.l.b16 %v314
    %v354 = vunpack.c.l.b16 %v315
    %v355 = vunpack.c.l.b16 %v316
    %v356 = vunpack.c.l.b16 %v317
    %v357 = vunpack.c.l.b16 %v318
    %v358 = vunpack.c.l.b16 %v319
    %v359 = vunpack.c.l.b16 %v320
    %v360 = vunpack.c.l.b16 %v321
    %v361 = vunpack.c.l.b16 %v322
    %v362 = vunpack.c.l.b16 %v323
    %v363 = vunpack.c.l.b16 %v324
    %v364 = vunpack.c.l.b16 %v325
    %v365 = vunpack.c.l.b16 %v326
    %v366 = vunpack.c.l.b16 %v327
    %v367 = vunpack.c.l.b16 %v328
    %v368 = vpack.c.b16 %v353, %v352
    %v369 = vpack.c.b16 %v355, %v354
    %v370 = vpack.c.b16 %v357, %v356
    %v371 = vpack.c.b16 %v359, %v358
    %v372 = vpack.c.b16 %v361, %v360
    %v373 = vpack.c.b16 %v363, %v362
    %v374 = vpack.c.b16 %v365, %v364
    %v375 = vpack.c.b16 %v367, %v366
    %384 = vmatprep.subr.bf16.mxu0 0
    %385 = vmatpush1.bf16.msra.mxu0 %v368
    %386 = vmatprep.subr.bf16.mxu0 0
    %387 = vmatpush1.bf16.msra.mxu0 %v369
    %388 = vmatprep.subr.bf16.mxu0 0
    %389 = vmatpush1.bf16.msra.mxu0 %v370
    %390 = vmatprep.subr.bf16.mxu0 0
    %391 = vmatpush1.bf16.msra.mxu0 %v371
    %392 = vmatprep.subr.bf16.mxu0 0
    %393 = vmatpush1.bf16.msra.mxu0 %v372
    %394 = vmatprep.subr.bf16.mxu0 0
    %395 = vmatpush1.bf16.msra.mxu0 %v373
    %396 = vmatprep.subr.bf16.mxu0 0
    %397 = vmatpush1.bf16.msra.mxu0 %v374
    %398 = vmatprep.subr.bf16.mxu0 0
    %399 = vmatpush1.bf16.msra.mxu0 %v375
    %400 = vmatprep.subr.bf16.mxu0 0
    %401 = vmatpush1.bf16.msra.mxu0 0
    %402 = vmatprep.subr.bf16.mxu0 0
    %403 = vmatpush1.bf16.msra.mxu0 0
    %404 = vmatprep.subr.bf16.mxu0 0
    %405 = vmatpush1.bf16.msra.mxu0 0
    %406 = vmatprep.subr.bf16.mxu0 0
    %407 = vmatpush1.bf16.msra.mxu0 0
    %408 = vmatprep.subr.bf16.mxu0 0
    %409 = vmatpush1.bf16.msra.mxu0 0
    %410 = vmatprep.subr.bf16.mxu0 0
    %411 = vmatpush1.bf16.msra.mxu0 0
    %412 = vmatprep.subr.bf16.mxu0 0
    %413 = vmatpush1.bf16.msra.mxu0 0
    %414 = vmatprep.subr.bf16.mxu0 0
    %415 = vmatpush1.bf16.msra.mxu0 0
    %416 = vmatprep.mubr.bf16.mxu0 0
    %417 = vmatmul.mubr.bf16.gmra.mrb[0].mxu0 %v312
    %v418 = vpop.f32.mrb[0].mxu0
    %v419 = vadd.f32 %v334, %v418
    %v420 = vpop.f32.mrb[0].mxu0
    %v421 = vpop.f32.mrb[0].mxu0
    %v422 = vpop.f32.mrb[0].mxu0
    %423 = vdwg.mxu0
    %424 = vst [vmem:[#allocation11] sm:$0xff] %v419
    // Predicated region
    $region50: #{tpu_custom_call.1} parent=1 // pred_check
      _
    $region51: #{tpu_custom_call.1} parent=1 // pred_check_branch
      %426 = sbr.rel (0) target = $region53
    $region52: #{tpu_custom_call.1} parent=1 // pred_region
      %s428 = ssub.s32 128, 128
      %429 = vsyncadd [#allocation5], %s428
      %s431 = sshll.u32 [#allocation11], 4
      %s432 = int_to_ptr.vmem [resolvable:$true] %s431
      %434 = dma.vmem_to_hbm [thread:$0]  %s432, 128, %s7, [#allocation5]
    $region53: #{tpu_custom_call.1} parent=1 // pred_fallthru
      _
    // Predicated region
    $region54: #{tpu_custom_call.1} parent=1 // pred_check
      _
    $region55: #{tpu_custom_call.1} parent=1 // pred_check_branch
      %436 = sbr.rel (0) target = $region57
    $region56: #{tpu_custom_call.1} parent=1 // pred_region
      %437 = dma.done [#allocation5], 128
    $region57: #{tpu_custom_call.1} parent=1 // pred_fallthru
      _
    %438 = vsyncpa [#allocation4], 1
    %439 = vsyncpa [#allocation7], 1
    %440 = vsyncpa [#allocation10], 1
    %441 = vsyncpa [#allocation5], 1

</llo_original>
